<compile_context>
chip_gen: v7x
topology: tpu7x:2x2x1
jax: 0.10.0
libtpu: 0.0.40
codegen_flags: <defaults>
</compile_context>

<pallas_src>
import functools

import jax
import jax.numpy as jnp
from jax.experimental import pallas as pl
from jax.experimental.pallas import tpu as pltpu


def _round_up(x, m):
    return (x + m - 1) // m * m


def _vmem_budget(f32_elems):
    # ~3x head-room for double buffering / temporaries, clamped to [32, 64] MiB so
    # the limit is valid on every generation (v7x has 64 MiB per TensorCore).
    need = 12 * f32_elems + (8 << 20)
    return int(min(64 << 20, max(32 << 20, need)))


# --------------------------- one-time parameter prep -------------------------
def prepare_gat_params(w_weight, w_bias, a_weight, a_bias):
    """Pad W/b once and fold the attention projections into spare output rows.

    h_full[:, :D]  = x @ W^T + b                (the GAT hidden features)
    h_full[:, D]   = a_self·h + a_bias          (self score per node)
    h_full[:, D+1] = a_nbr ·h                   (neighbor score per node)
    """
    f32 = jnp.float32
    D, Kin = w_weight.shape
    Kp = _round_up(Kin, 128)
    Dp = _round_up(D + 2, 128)            # +2 rows for the folded projections
    W = w_weight.astype(f32)
    b = w_bias.astype(f32)
    a_self = a_weight[0, :D].astype(f32)
    a_nbr = a_weight[0, D:].astype(f32)
    ab = a_bias.astype(f32)[0]

    w_pad = jnp.zeros((Dp, Kp), f32)
    w_pad = w_pad.at[:D, :Kin].set(W)
    w_pad = w_pad.at[D, :Kin].set(a_self @ W)
    w_pad = w_pad.at[D + 1, :Kin].set(a_nbr @ W)

    b_pad = jnp.zeros((1, Dp), f32)
    b_pad = b_pad.at[0, :D].set(b)
    b_pad = b_pad.at[0, D].set(jnp.dot(a_self, b) + ab)
    b_pad = b_pad.at[0, D + 1].set(jnp.dot(a_nbr, b))

    return {"w_pad": w_pad, "b_pad": b_pad, "D": D, "Kin": Kin, "Kp": Kp, "Dp": Dp}


# ----------------------------- Kernel 1: linear ------------------------------
def linear_kernel(x_ref, w_ref, b_ref, h_ref):
    # h = x @ W_pad^T + b_pad ; weight transpose absorbed by the MXU.
    h = jax.lax.dot_general(x_ref[...], w_ref[...], (((1,), (1,)), ((), ())),
                            preferred_element_type=jnp.float32)
    h_ref[...] = (h + b_ref[...]).astype(h_ref.dtype)


def linear_pallas(x, w_pad, b_pad, tm):
    Mp, Kp = x.shape
    Dp = w_pad.shape[0]
    return pl.pallas_call(
        linear_kernel,
        out_shape=jax.ShapeDtypeStruct((Mp, Dp), jnp.float32),
        grid_spec=pltpu.PrefetchScalarGridSpec(
            num_scalar_prefetch=0,
            grid=(Mp // tm,),
            in_specs=[
                pl.BlockSpec((tm, Kp), lambda i: (i, 0)),
                pl.BlockSpec((Dp, Kp), lambda i: (0, 0)),   # weights resident
                pl.BlockSpec((1, Dp), lambda i: (0, 0)),
            ],
            out_specs=pl.BlockSpec((tm, Dp), lambda i: (i, 0)),
        ),
        compiler_params=pltpu.CompilerParams(
            dimension_semantics=("parallel",),
            vmem_limit_bytes=_vmem_budget(tm * Kp + Dp * Kp + tm * Dp),
        ),
    )(x, w_pad, b_pad)


# ------------------- Kernel 2: fused gather + attention + agg ----------------
def gat_attn_kernel(nodes_ref, nbrs_ref, mask_ref, h_ref, o_ref, *, d_col, k_nbrs):
    tn = nodes_ref.shape[0]
    Mp, Dp = h_ref.shape
    h = h_ref[...]                                                     # (Mp, Dp) resident

    # Hoisted iotas / column selectors (built once, reused every k).
    iota_rows = jax.lax.broadcasted_iota(jnp.int32, (tn, Mp), 1)
    col_iota = jax.lax.broadcasted_iota(jnp.int32, (1, Dp), 1)
    sel_self = (col_iota == d_col).astype(jnp.float32)                 # picks column D
    sel_nbr = (col_iota == d_col + 1).astype(jnp.float32)              # picks column D+1

    # Self score gathered on the MXU via a one-hot row select (column D of h).
    oh_self = (iota_rows == nodes_ref[...]).astype(jnp.float32)        # (tn, Mp)
    g_self = jnp.dot(oh_self, h, preferred_element_type=jnp.float32)   # (tn, Dp)
    s_self = jnp.sum(g_self * sel_self, axis=-1, keepdims=True)        # (tn, 1)

    # Streaming masked softmax over the K neighbors (flash-attention style):
    # per k -> one 2-D one-hot compare, one MXU gather, O(tn*Dp) VPU update.
    m_run = jnp.full((tn, 1), -1e30, jnp.float32)
    l_run = jnp.zeros((tn, 1), jnp.float32)
    acc = jnp.zeros((tn, Dp), jnp.float32)
    for k in range(k_nbrs):
        oh_k = (iota_rows == nbrs_ref[:, k:k + 1]).astype(jnp.float32)  # (tn, Mp)
        g_k = jnp.dot(oh_k, h, preferred_element_type=jnp.float32)      # (tn, Dp) MXU gather
        s_nbr = jnp.sum(g_k * sel_nbr, axis=-1, keepdims=True)          # (tn, 1) a_nbr·h[nbr]
        e_k = s_self + s_nbr                                             # a·[h_u;h_v] + a_b
        e_k = jnp.where(e_k > 0, e_k, 0.01 * e_k)                        # LeakyReLU (slope 0.01)
        msk_k = mask_ref[:, k:k + 1]
        e_k = jnp.where(msk_k > 0, e_k, -1e30)
        m_new = jnp.maximum(m_run, e_k)
        scale = jnp.exp(m_run - m_new)
        p_k = jnp.exp(e_k - m_new) * msk_k
        acc = acc * scale + p_k * g_k
        l_run = l_run * scale + p_k
        m_run = m_new

    # TODO(synk): train-mode dropout on alpha skipped (eval-mode identity).
    # EUP reciprocal; the max() guard makes all-masked rows produce zeros, not NaN.
    inv_l = pl.reciprocal(jnp.maximum(l_run, 1e-30), approx=True)
    o_ref[...] = (acc * inv_l).astype(o_ref.dtype)


def gat_attention_pallas(nodes_p, nbrs_p, mask_p, h_full, tn, d_col):
    Np, K = nbrs_p.shape
    Mp, Dp = h_full.shape
    kernel = functools.partial(gat_attn_kernel, d_col=d_col, k_nbrs=K)
    return pl.pallas_call(
        kernel,
        out_shape=jax.ShapeDtypeStruct((Np, Dp), jnp.float32),
        grid_spec=pltpu.PrefetchScalarGridSpec(
            num_scalar_prefetch=0,
            grid=(Np // tn,),
            in_specs=[
                pl.BlockSpec((tn, 1), lambda i: (i, 0)),
                pl.BlockSpec((tn, K), lambda i: (i, 0)),
                pl.BlockSpec((tn, K), lambda i: (i, 0)),
                pl.BlockSpec((Mp, Dp), lambda i: (0, 0)),    # h resident (fits VMEM here)
            ],
            out_specs=pl.BlockSpec((tn, Dp), lambda i: (i, 0)),
        ),
        compiler_params=pltpu.CompilerParams(
            dimension_semantics=("parallel",),
            vmem_limit_bytes=_vmem_budget(
                2 * Mp * Dp + (K + 6) * tn * Dp + 3 * tn * Mp),
        ),
    )(nodes_p, nbrs_p, mask_p, h_full)


# ------------------------------ Forward wrapper ------------------------------
def graph_attention_forward(features, nodes, neighbors, params, nbr_mask=None):
    """features: (m, input_dim); nodes: (N,) int32; neighbors: (N, K) int32."""
    f32 = jnp.float32
    m, Kin = features.shape
    N, K = neighbors.shape
    D, Kp, Dp = params["D"], params["Kp"], params["Dp"]
    assert Kin == params["Kin"], "feature dim mismatch with prepared params"

    # Tile choices: 256 for large m/N (v6e/v7x MXU & >=2 blocks per TC), 128 at
    # medium sizes, whole problem (rounded to 8 sublanes) for toy sizes.
    tm = 256 if m >= 512 else (128 if m >= 128 else _round_up(m, 8))
    Mp = _round_up(m, tm)
    tn = 256 if N >= 512 else (128 if N >= 128 else _round_up(N, 8))
    Np = _round_up(N, tn)

    # Activation padding only when shapes are not already tile-aligned.
    x = features.astype(f32)
    if (Mp, Kp) != (m, Kin):
        x = jnp.pad(x, ((0, Mp - m), (0, Kp - Kin)))

    h_full = linear_pallas(x, params["w_pad"], params["b_pad"], tm=tm)   # (Mp, Dp)

    nodes_i = nodes.astype(jnp.int32).reshape(N, 1)
    nbrs_i = neighbors.astype(jnp.int32)
    msk = jnp.ones((N, K), f32) if nbr_mask is None else nbr_mask.astype(f32)
    if Np != N:
        nodes_i = jnp.pad(nodes_i, ((0, Np - N), (0, 0)))
        nbrs_i = jnp.pad(nbrs_i, ((0, Np - N), (0, 0)))
        msk = jnp.pad(msk, ((0, Np - N), (0, 0)))        # padded rows fully masked

    out_pad = gat_attention_pallas(nodes_i, nbrs_i, msk, h_full, tn=tn, d_col=D)
    return out_pad[:N, :D]


# ----------------------------- pure-JAX reference ----------------------------
def graph_attention_reference(features, nodes, neighbors,
                              w_weight, w_bias, a_weight, a_bias):
    h = features @ w_weight.T + w_bias
    D = h.shape[1]
    self_h = h[nodes]                         # (N, D)
    nbr_h = h[neighbors]                      # (N, K, D)
    e = (self_h @ a_weight[0, :D])[:, None] + nbr_h @ a_weight[0, D:] + a_bias[0]
    e = jnp.where(e > 0, e, 0.01 * e)
    alpha = jax.nn.softmax(e, axis=-1)
    return jnp.einsum("nk,nkd->nd", alpha, nbr_h)


if __name__ == "__main__":
    key = jax.random.PRNGKey(0)
    input_dim, output_dim = 16, 32
    m = 32    # total nodes in `features`
    N = 8     # target nodes
    K = 4     # neighbors per target node (fixed for static shapes)

    k1, k2, k3, k4, k5, k6, k7 = jax.random.split(key, 7)
    features = jax.random.normal(k1, (m, input_dim), jnp.float32)

    # nn.Linear(input_dim, output_dim): weight (out, in), bias (out,)
    bw = 1.0 / jnp.sqrt(jnp.float32(input_dim))
    w_weight = jax.random.uniform(k2, (output_dim, input_dim), jnp.float32, -bw, bw)
    w_bias = jax.random.uniform(k3, (output_dim,), jnp.float32, -bw, bw)
    # nn.Linear(2*output_dim, 1): weight (1, 2*out), bias (1,)
    ba = 1.0 / jnp.sqrt(jnp.float32(2 * output_dim))
    a_weight = jax.random.uniform(k4, (1, 2 * output_dim), jnp.float32, -ba, ba)
    a_bias = jax.random.uniform(k5, (1,), jnp.float32, -ba, ba)

    nodes = jax.random.permutation(k6, m)[:N].astype(jnp.int32)          # distinct targets
    neighbors = jax.random.randint(k7, (N, K), 0, m, dtype=jnp.int32)    # K neighbors each

    params = prepare_gat_params(w_weight, w_bias, a_weight, a_bias)      # one-time padding
    out = graph_attention_forward(features, nodes, neighbors, params)
    out = jax.block_until_ready(out)

    ref = graph_attention_reference(features, nodes, neighbors,
                                    w_weight, w_bias, a_weight, a_bias)
    assert out.shape == (N, output_dim)
    assert jnp.allclose(out, ref, rtol=2e-3, atol=2e-3), "mismatch vs reference"

    print("KERNEL_OK")
</pallas_src>

<mosaic_0001>
module attributes {stable_mosaic.version = 11 : i64} {
  func.func @linear_kernel(%arg0: i32, %arg1: memref<32x128xf32, #tpu.memory_space<vmem>>, %arg2: memref<128x128xf32, #tpu.memory_space<vmem>>, %arg3: memref<1x128xf32, #tpu.memory_space<vmem>>, %arg4: memref<32x128xf32, #tpu.memory_space<vmem>>) attributes {dimension_semantics = [#tpu.dimension_semantics<parallel>], iteration_bounds = array<i64: 1>, scalar_prefetch = 0 : i64, scratch_operands = 0 : i64, tpu.core_type = #tpu.core_type<tc>, window_params = [{transform_indices = @transform_0, window_bounds = array<i64: 32, 128>}, {pipeline_mode = #tpu.pipeline_mode<synchronous>, transform_indices = @transform_1, window_bounds = array<i64: 128, 128>}, {pipeline_mode = #tpu.pipeline_mode<synchronous>, transform_indices = @transform_2, window_bounds = array<i64: 1, 128>}, {transform_indices = @transform_3, window_bounds = array<i64: 32, 128>}]} {
    %c0 = arith.constant 0 : index
    %c0_0 = arith.constant 0 : index
    %0 = vector.load %arg1[%c0, %c0_0] : memref<32x128xf32, #tpu.memory_space<vmem>>, vector<32x128xf32>
    %c0_1 = arith.constant 0 : index
    %c0_2 = arith.constant 0 : index
    %1 = vector.load %arg2[%c0_1, %c0_2] : memref<128x128xf32, #tpu.memory_space<vmem>>, vector<128x128xf32>
    %cst = arith.constant dense<0.000000e+00> : vector<32x128xf32>
    %2 = tpu.matmul %0, %1, %cst {dimension_numbers = #tpu.dot_dimension_numbers<[1], [1], [0], [0], [0, 0, 1, 0], [], []>} : vector<32x128xf32>, vector<128x128xf32>, vector<32x128xf32> -> vector<32x128xf32>
    %c0_3 = arith.constant 0 : index
    %c0_4 = arith.constant 0 : index
    %3 = vector.load %arg3[%c0_3, %c0_4] : memref<1x128xf32, #tpu.memory_space<vmem>>, vector<1x128xf32>
    %4 = vector.broadcast %3 : vector<1x128xf32> to vector<32x128xf32>
    %5 = arith.addf %2, %4 : vector<32x128xf32>
    %c0_5 = arith.constant 0 : index
    %c0_6 = arith.constant 0 : index
    %6 = vector.load %arg4[%c0_5, %c0_6] : memref<32x128xf32, #tpu.memory_space<vmem>>, vector<32x128xf32>
    tpu.vector_store %arg4[%c0_5, %c0_6], %5 {strides = array<i32>} : memref<32x128xf32, #tpu.memory_space<vmem>>, vector<32x128xf32>,
    return
  }
  func.func @transform_0(%arg0: i32) -> (i32, i32) {
    %c0_i32 = arith.constant 0 : i32
    %c0_i32_0 = arith.constant 0 : i32
    return %arg0, %c0_i32 : i32, i32
  }
  func.func @transform_1(%arg0: i32) -> (i32, i32) {
    %c0_i32 = arith.constant 0 : i32
    %c0_i32_0 = arith.constant 0 : i32
    %c0_i32_1 = arith.constant 0 : i32
    return %c0_i32, %c0_i32_0 : i32, i32
  }
  func.func @transform_2(%arg0: i32) -> (i32, i32) {
    %c0_i32 = arith.constant 0 : i32
    %c0_i32_0 = arith.constant 0 : i32
    %c0_i32_1 = arith.constant 0 : i32
    return %c0_i32, %c0_i32_0 : i32, i32
  }
  func.func @transform_3(%arg0: i32) -> (i32, i32) {
    %c0_i32 = arith.constant 0 : i32
    %c0_i32_0 = arith.constant 0 : i32
    return %arg0, %c0_i32 : i32, i32
  }
}

</mosaic_0001>

<llo_original>
// kernel: tpu_custom_call.1
$region0: #{tpu_custom_call.1}
  #allocation0 [shape = 'u32[]', space=smem, size = 0x4, offset = 0x4, fixed_abs, tag = 'smem constant byte address 0x4 - core index']
  #allocation1 [shape = 'u32[144,128]{1,0:T(1,128)}', space=vmem, size = 0x12000, scoped, tag = 'internal scratch']
  %s0 = inlined_call_operand.hbm [shape: f32[32,128], index: 0, kind: input, shape index: {}]
  %s1 = inlined_call_operand.hbm [shape: f32[128,128], index: 1, kind: input, shape index: {}]
  %s2 = inlined_call_operand.vmem [shape: f32[1,128], index: 2, kind: input, shape index: {}]
  %s3 = inlined_call_operand.hbm [shape: f32[32,128], index: 3, kind: output, shape index: {}]
  %s4 = sld [smem:[#allocation0]]
  $region30: #{tpu_custom_call.1} parent=0
    _
  %s6 = ssub.s32 1, %s4
  %s7 = scalar_select 0, %s6, %s4
  $region1: #{tpu_custom_call.1} parent=0
    #allocation2 [shape = 'u8[16384]{0}', space=vmem, size = 0x4000, scoped, tag = 'input window, operand 0, single buffered']
    #allocation3 [shape = 's32[1]{0}', space=sflag, size = 0x4, scoped, tag = 'scoped memory for tpu_custom_call.1']
    #allocation4 [shape = 's32[1]{0}', space=sflag, size = 0x4, scoped, tag = 'scoped memory for tpu_custom_call.1']
    #allocation5 [shape = 'u8[65536]{0}', space=vmem, size = 0x10000, scoped, tag = 'input window, operand 1, single buffered']
    #allocation6 [shape = 's32[1]{0}', space=sflag, size = 0x4, scoped, tag = 'scoped memory for tpu_custom_call.1']
    #allocation7 [shape = 'u8[16384]{0}', space=vmem, size = 0x4000, scoped, tag = 'output window, operand 0, single buffered']
    %8 = vsyncpa [#allocation3], 0
    %9 = vsyncpa [#allocation6], 0
    %10 = vsyncpa [#allocation4], 0
    // Predicated region
    $region2: #{tpu_custom_call.1} parent=1 // pred_check
      _
    $region3: #{tpu_custom_call.1} parent=1 // pred_check_branch
      %12 = sbr.rel (0) target = $region5
    $region4: #{tpu_custom_call.1} parent=1 // pred_region
      %s14 = ssub.s32 512, 512
      %15 = vsyncadd [#allocation3], %s14
      %s16 = sshll.u32 [#allocation2], 4
      %s17 = int_to_ptr.vmem [resolvable:$true] %s16
      %22 = dma.hbm_to_vmem [thread:$0]  %s0, 512, %s17, [#allocation3], 128, 128, 8
    $region5: #{tpu_custom_call.1} parent=1 // pred_fallthru
      _
    // Predicated region
    $region6: #{tpu_custom_call.1} parent=1 // pred_check
      _
    $region7: #{tpu_custom_call.1} parent=1 // pred_check_branch
      %24 = sbr.rel (0) target = $region9
    $region8: #{tpu_custom_call.1} parent=1 // pred_region
      %s26 = ssub.s32 2048, 2048
      %27 = vsyncadd [#allocation6], %s26
      %s28 = sshll.u32 [#allocation5], 4
      %s29 = int_to_ptr.vmem [resolvable:$true] %s28
      %34 = dma.hbm_to_vmem [thread:$0]  %s1, 2048, %s29, [#allocation6], 128, 128, 8
    $region9: #{tpu_custom_call.1} parent=1 // pred_fallthru
      _
    // Predicated region
    $region10: #{tpu_custom_call.1} parent=1 // pred_check
      _
    $region11: #{tpu_custom_call.1} parent=1 // pred_check_branch
      %36 = sbr.rel (0) target = $region13
    $region12: #{tpu_custom_call.1} parent=1 // pred_region
      _
    $region13: #{tpu_custom_call.1} parent=1 // pred_fallthru
      _
    // Predicated region
    $region14: #{tpu_custom_call.1} parent=1 // pred_check
      _
    $region15: #{tpu_custom_call.1} parent=1 // pred_check_branch
      %38 = sbr.rel (0) target = $region17
    $region16: #{tpu_custom_call.1} parent=1 // pred_region
      %39 = dma.done [#allocation3], 512
    $region17: #{tpu_custom_call.1} parent=1 // pred_fallthru
      _
    // Predicated region
    $region18: #{tpu_custom_call.1} parent=1 // pred_check
      _
    $region19: #{tpu_custom_call.1} parent=1 // pred_check_branch
      %41 = sbr.rel (0) target = $region21
    $region20: #{tpu_custom_call.1} parent=1 // pred_region
      %42 = dma.done [#allocation6], 2048
    $region21: #{tpu_custom_call.1} parent=1 // pred_fallthru
      _
    %v43 = vld [vmem:[#allocation2] sm:$0xff]
    %v44 = vld [vmem:[#allocation2 + $0x8] sm:$0xff]
    %v45 = vld [vmem:[#allocation2 + $0x10] sm:$0xff]
    %v46 = vld [vmem:[#allocation2 + $0x18] sm:$0xff]
    %v47 = vld [vmem:[#allocation5] sm:$0xff]
    %v48 = vld [vmem:[#allocation5 + $0x8] sm:$0xff]
    %v49 = vld [vmem:[#allocation5 + $0x10] sm:$0xff]
    %v50 = vld [vmem:[#allocation5 + $0x18] sm:$0xff]
    %v51 = vld [vmem:[#allocation5 + $0x20] sm:$0xff]
    %v52 = vld [vmem:[#allocation5 + $0x28] sm:$0xff]
    %v53 = vld [vmem:[#allocation5 + $0x30] sm:$0xff]
    %v54 = vld [vmem:[#allocation5 + $0x38] sm:$0xff]
    %v55 = vld [vmem:[#allocation5 + $0x40] sm:$0xff]
    %v56 = vld [vmem:[#allocation5 + $0x48] sm:$0xff]
    %v57 = vld [vmem:[#allocation5 + $0x50] sm:$0xff]
    %v58 = vld [vmem:[#allocation5 + $0x58] sm:$0xff]
    %v59 = vld [vmem:[#allocation5 + $0x60] sm:$0xff]
    %v60 = vld [vmem:[#allocation5 + $0x68] sm:$0xff]
    %v61 = vld [vmem:[#allocation5 + $0x70] sm:$0xff]
    %v62 = vld [vmem:[#allocation5 + $0x78] sm:$0xff]
    %v63 = vld [vmem:[%s2] sm:$0x1]
    %v65 = vlaneseq
    %v66 = vshrl.u32 %v65, 7
    %v67 = vsub.s32 0, %v66
    %v68 = vrot.slane %v63, %v67
    %70 = vmatprep.subr.mxu0 0.0
    %71 = vmatpush1.xpose.msra.mxu0 %v47
    %72 = vmatprep.subr.mxu0 0.0
    %73 = vmatpush1.xpose.msra.mxu0 %v48
    %74 = vmatprep.subr.mxu0 0.0
    %75 = vmatpush1.xpose.msra.mxu0 %v49
    %76 = vmatprep.subr.mxu0 0.0
    %77 = vmatpush1.xpose.msra.mxu0 %v50
    %78 = vmatprep.subr.mxu0 0.0
    %79 = vmatpush1.xpose.msra.mxu0 %v51
    %80 = vmatprep.subr.mxu0 0.0
    %81 = vmatpush1.xpose.msra.mxu0 %v52
    %82 = vmatprep.subr.mxu0 0.0
    %83 = vmatpush1.xpose.msra.mxu0 %v53
    %84 = vmatprep.subr.mxu0 0.0
    %85 = vmatpush1.xpose.msra.mxu0 %v54
    %86 = vmatprep.subr.mxu0 0.0
    %87 = vmatpush1.xpose.msra.mxu0 %v55
    %88 = vmatprep.subr.mxu0 0.0
    %89 = vmatpush1.xpose.msra.mxu0 %v56
    %90 = vmatprep.subr.mxu0 0.0
    %91 = vmatpush1.xpose.msra.mxu0 %v57
    %92 = vmatprep.subr.mxu0 0.0
    %93 = vmatpush1.xpose.msra.mxu0 %v58
    %94 = vmatprep.subr.mxu0 0.0
    %95 = vmatpush1.xpose.msra.mxu0 %v59
    %96 = vmatprep.subr.mxu0 0.0
    %97 = vmatpush1.xpose.msra.mxu0 %v60
    %98 = vmatprep.subr.mxu0 0.0
    %99 = vmatpush1.xpose.msra.mxu0 %v61
    %100 = vmatprep.subr.mxu0 0.0
    %101 = vmatpush1.xpose.msra.mxu0 %v62
    %102 = vmatprep.subr.mxu0 0.0
    %103 = vmatpush1.xpose.msra.mxu0 0.0
    %104 = vmatprep.subr.mxu0 0.0
    %105 = vmatpush1.xpose.msra.mxu0 0.0
    %106 = vmatprep.subr.mxu0 0.0
    %107 = vmatpush1.xpose.msra.mxu0 0.0
    %108 = vmatprep.subr.mxu0 0.0
    %109 = vmatpush1.xpose.msra.mxu0 0.0
    %110 = vmatprep.subr.mxu0 0.0
    %111 = vmatpush1.xpose.msra.mxu0 0.0
    %112 = vmatprep.subr.mxu0 0.0
    %113 = vmatpush1.xpose.msra.mxu0 0.0
    %114 = vmatprep.subr.mxu0 0.0
    %115 = vmatpush1.xpose.msra.mxu0 0.0
    %116 = vmatprep.subr.mxu0 0.0
    %117 = vmatpush1.xpose.msra.mxu0 0.0
    %118 = vmatprep.subr.mxu0 0.0
    %119 = vmatpush1.xpose.msra.mxu0 0.0
    %120 = vmatprep.subr.mxu0 0.0
    %121 = vmatpush1.xpose.msra.mxu0 0.0
    %122 = vmatprep.subr.mxu0 0.0
    %123 = vmatpush1.xpose.msra.mxu0 0.0
    %124 = vmatprep.subr.mxu0 0.0
    %125 = vmatpush1.xpose.msra.mxu0 0.0
    %126 = vmatprep.subr.mxu0 0.0
    %127 = vmatpush1.xpose.msra.mxu0 0.0
    %128 = vmatprep.subr.mxu0 0.0
    %129 = vmatpush1.xpose.msra.mxu0 0.0
    %130 = vmatprep.subr.mxu0 0.0
    %131 = vmatpush1.xpose.msra.mxu0 0.0
    %132 = vmatprep.subr.mxu0 0.0
    %133 = vmatpush1.xpose.msra.mxu0 0.0
    %134 = vmatprep.mubr.f32.mxu0 0.0
    %135 = vmatmul.mubr.f32.gmra.mrb[0].mxu0 %v43
    %v136 = vpop.f32.mrb[0].mxu0
    %v137 = vadd.f32 %v68, %v136
    %v138 = vpop.f32.mrb[0].mxu0
    %139 = vmatprep.mubr.f32.mxu0 0.0
    %140 = vmatmul.mubr.f32.gmra.mrb[0].mxu0 %v44
    %v141 = vpop.f32.mrb[0].mxu0
    %v142 = vadd.f32 %v68, %v141
    %v143 = vpop.f32.mrb[0].mxu0
    %144 = vmatprep.mubr.f32.mxu0 0.0
    %145 = vmatmul.mubr.f32.gmra.mrb[0].mxu0 %v45
    %v146 = vpop.f32.mrb[0].mxu0
    %v147 = vadd.f32 %v68, %v146
    %v148 = vpop.f32.mrb[0].mxu0
    %149 = vmatprep.mubr.f32.mxu0 0.0
    %150 = vmatmul.mubr.f32.gmra.mrb[0].mxu0 %v46
    %v151 = vpop.f32.mrb[0].mxu0
    %v152 = vadd.f32 %v68, %v151
    %v153 = vpop.f32.mrb[0].mxu0
    %154 = vdwg.mxu0
    %155 = vst [vmem:[#allocation7] sm:$0xff] %v137
    %156 = vst [vmem:[#allocation7 + $0x8] sm:$0xff] %v142
    %157 = vst [vmem:[#allocation7 + $0x10] sm:$0xff] %v147
    %158 = vst [vmem:[#allocation7 + $0x18] sm:$0xff] %v152
    // Predicated region
    $region22: #{tpu_custom_call.1} parent=1 // pred_check
      _
    $region23: #{tpu_custom_call.1} parent=1 // pred_check_branch
      %160 = sbr.rel (0) target = $region25
    $region24: #{tpu_custom_call.1} parent=1 // pred_region
      %s162 = ssub.s32 512, 512
      %163 = vsyncadd [#allocation4], %s162
      %s164 = sshll.u32 [#allocation7], 4
      %s165 = int_to_ptr.vmem [resolvable:$true] %s164
      %170 = dma.vmem_to_hbm [thread:$0]  %s165, 512, %s3, [#allocation4], 128, 128, 8
    $region25: #{tpu_custom_call.1} parent=1 // pred_fallthru
      _
    // Predicated region
    $region26: #{tpu_custom_call.1} parent=1 // pred_check
      _
    $region27: #{tpu_custom_call.1} parent=1 // pred_check_branch
      %172 = sbr.rel (0) target = $region29
    $region28: #{tpu_custom_call.1} parent=1 // pred_region
      %173 = dma.done [#allocation4], 512
    $region29: #{tpu_custom_call.1} parent=1 // pred_fallthru
      _
    %174 = vsyncpa [#allocation3], 1
    %175 = vsyncpa [#allocation6], 1
    %176 = vsyncpa [#allocation4], 1

</llo_original>
